<compile_context>
chip_gen: v7x
topology: tpu7x:2x2x1
jax: 0.10.0
libtpu: 0.0.40
codegen_flags: <defaults>
</compile_context>

<pallas_src>
import functools

import jax
import jax.numpy as jnp
from jax import lax
from jax.experimental import pallas as pl
from jax.experimental.pallas import tpu as pltpu


def _round_up(a, b):
    return ((a + b - 1) // b) * b


def _pwff_kernel(x_ref, w1_ref, b1_ref, w2_ref, b2_ref, a2_ref, bln_ref, o_ref,
                 *, eps, d_hid, apply_ln, approx_recip):
    # x_ref: (rb, d_hid_pad) rows = flattened (batch, position); weights are full tiles.
    x = x_ref[...]                       # (rb, d_hid_pad), input dtype
    w1 = w1_ref[...]                     # (d_hid_pad, d_inner_pad), matmul dtype
    w2 = w2_ref[...]                     # (d_inner_pad, d_hid_pad), matmul dtype

    # FFN layer 1: relu(x @ W1 + b1). Operands in matmul dtype, f32 MXU accumulation.
    h = jnp.dot(x.astype(w1.dtype), w1, preferred_element_type=jnp.float32)
    h = jnp.maximum(h + b1_ref[...].astype(jnp.float32), 0.0)

    # FFN layer 2: h @ W2 + b2.
    y = jnp.dot(h.astype(w2.dtype), w2, preferred_element_type=jnp.float32)
    y = y + b2_ref[...].astype(jnp.float32)

    # dropout: eval-mode identity.

    # Residual add (f32).
    z = y + x.astype(jnp.float32)        # (rb, d_hid_pad)

    if apply_ln:
        d_pad = z.shape[-1]
        if d_pad != d_hid:
            # Mask the padded feature columns out of the LN statistics.
            mask = lax.broadcasted_iota(jnp.int32, (1, d_pad), 1) < d_hid
            zm = jnp.where(mask, z, 0.0)
            mu = jnp.sum(zm, axis=-1, keepdims=True) * (1.0 / d_hid)
            diff = jnp.where(mask, z - mu, 0.0)
        else:
            mu = jnp.mean(z, axis=-1, keepdims=True)
            diff = z - mu
        # torch.std default: unbiased (ddof=1); eps added to sigma (not to var).
        var = jnp.sum(diff * diff, axis=-1, keepdims=True) * (1.0 / (d_hid - 1))
        denom = jnp.sqrt(var) + eps                                  # (rb, 1)
        if approx_recip:
            inv = pl.reciprocal(denom, approx=True)                  # EUP slot (free-ish)
        else:
            inv = 1.0 / denom
        z = diff * inv * a2_ref[...].astype(jnp.float32) + bln_ref[...].astype(jnp.float32)

    o_ref[...] = z.astype(o_ref.dtype)


def positionwise_feed_forward(x, w1, b1, w2, b2, a2, bln, *, eps=0.001,
                              max_block_rows=512, matmul_dtype=None,
                              approx_recip=False):
    """Pallas TPU implementation of PositionwiseFeedForward.forward (eval mode).

    x:   (B, L, d_hid)
    w1:  (d_inner, d_hid)  -- Conv1d(d_hid, d_inner, 1) weight, kernel dim squeezed
    b1:  (d_inner,)
    w2:  (d_hid, d_inner)  -- Conv1d(d_inner, d_hid, 1) weight, kernel dim squeezed
    b2:  (d_hid,)
    a2:  (d_hid,)          -- LayerNormalization scale
    bln: (d_hid,)          -- LayerNormalization bias
    matmul_dtype: optional compute dtype for the two MXU matmuls (e.g. jnp.bfloat16).
    """
    B, L, d_hid = x.shape
    d_inner = w1.shape[0]
    assert w1.shape == (d_inner, d_hid)
    assert w2.shape == (d_hid, d_inner)
    assert b1.shape == (d_inner,) and b2.shape == (d_hid,)
    assert a2.shape == (d_hid,) and bln.shape == (d_hid,)

    mm_dtype = jnp.dtype(matmul_dtype) if matmul_dtype is not None else jnp.dtype(x.dtype)
    x_item = jnp.dtype(x.dtype).itemsize
    mm_item = mm_dtype.itemsize

    # Lane-dense feature padding (no-op when d_hid/d_inner are already 128 multiples).
    d_hid_p = _round_up(d_hid, 128)
    d_inner_p = _round_up(d_inner, 128)

    # Wrapper-side layout plumbing on the small parameter arrays (no in-kernel transpose).
    w1t = jnp.pad(jnp.asarray(w1).T.astype(mm_dtype),
                  ((0, d_hid_p - d_hid), (0, d_inner_p - d_inner)))   # (d_hid_p, d_inner_p)
    w2t = jnp.pad(jnp.asarray(w2).T.astype(mm_dtype),
                  ((0, d_inner_p - d_inner), (0, d_hid_p - d_hid)))   # (d_inner_p, d_hid_p)
    b1r = jnp.pad(jnp.asarray(b1).astype(jnp.float32).reshape(1, d_inner),
                  ((0, 0), (0, d_inner_p - d_inner)))
    b2r = jnp.pad(jnp.asarray(b2).astype(jnp.float32).reshape(1, d_hid),
                  ((0, 0), (0, d_hid_p - d_hid)))
    a2r = jnp.pad(jnp.asarray(a2).astype(jnp.float32).reshape(1, d_hid),
                  ((0, 0), (0, d_hid_p - d_hid)))
    blr = jnp.pad(jnp.asarray(bln).astype(jnp.float32).reshape(1, d_hid),
                  ((0, 0), (0, d_hid_p - d_hid)))

    # Fold (batch, seq) into one lane-dense row slab.
    N = B * L
    x_flat = x.reshape(N, d_hid)
    if d_hid_p != d_hid:
        x_flat = jnp.pad(x_flat, ((0, 0), (0, d_hid_p - d_hid)))

    # VMEM budget (64 MiB fallback = v7x worst case).
    try:
        info = pltpu.get_tpu_info()
        phys_vmem = int(getattr(info, "vmem_capacity_bytes", 64 * 1024 * 1024))
    except Exception:
        phys_vmem = 64 * 1024 * 1024
    budget = int(phys_vmem * 0.7)

    def vmem_est(rb_, weight_bufs):
        weights = weight_bufs * 2 * d_hid_p * d_inner_p * mm_item
        params = weight_bufs * (d_inner_p + 3 * d_hid_p) * 4
        streamed = 2 * 2 * rb_ * d_hid_p * x_item           # x in + out, double-buffered
        interm = rb_ * d_inner_p * (4 + mm_item) + 4 * rb_ * d_hid_p * 4
        return weights + params + streamed + interm

    # Row-block selection: sublane-aligned for tiny inputs; otherwise 256-multiples
    # (MXU-friendly on all generations), >= 2 grid steps so v7x megacore splits rows,
    # shrunk until the VMEM estimate fits the budget.
    sublane = max(8, 32 // max(1, x_item))                  # 8 f32 / 16 bf16 / 32 int8
    mxu_rows = 256
    if N <= mxu_rows:
        rb = _round_up(N, sublane)
        n_rows = rb                                         # tiny pad only for small N
    else:
        n_blocks = max(2, -(-N // max(mxu_rows, max_block_rows)))
        rb = _round_up(-(-N // n_blocks), mxu_rows)
        rb = min(rb, _round_up(max(mxu_rows, max_block_rows), mxu_rows))
        while rb > mxu_rows and vmem_est(rb, 1) > budget:
            rb -= mxu_rows
        n_rows = N                                          # ragged last block, no bulk pad
    if n_rows != N:
        x_flat = jnp.pad(x_flat, ((0, n_rows - N), (0, 0)))

    grid = ((n_rows + rb - 1) // rb,)

    vmem_limit = max(32 * 1024 * 1024, int(vmem_est(rb, 2) * 1.3) + (2 << 20))
    vmem_limit = int(min(vmem_limit, phys_vmem - (2 << 20)))

    flops = 4 * N * d_hid * d_inner                          # two matmuls, 2 flops/MAC
    bytes_accessed = (2 * N * d_hid_p * x_item               # activations in + out
                      + 2 * d_hid_p * d_inner_p * mm_item)   # weights
    cost = pl.CostEstimate(flops=flops, transcendentals=0, bytes_accessed=bytes_accessed)

    kernel = functools.partial(
        _pwff_kernel, eps=float(eps), d_hid=d_hid,
        apply_ln=(L != 1), approx_recip=approx_recip)

    def _call(single_buffer_weights):
        const_kw = {}
        if single_buffer_weights:
            # Grid-invariant operands: one VMEM copy, no redundant re-DMA per step.
            const_kw = dict(pipeline_mode=pl.Buffered(1))

        def cspec(shape):
            return pl.BlockSpec(shape, lambda i: (0, 0), **const_kw)

        return pl.pallas_call(
            kernel,
            out_shape=jax.ShapeDtypeStruct((n_rows, d_hid_p), x.dtype),
            grid_spec=pltpu.PrefetchScalarGridSpec(
                num_scalar_prefetch=0,
                grid=grid,
                in_specs=[
                    pl.BlockSpec((rb, d_hid_p), lambda i: (i, 0)),   # x rows (streamed)
                    cspec((d_hid_p, d_inner_p)),                     # W1^T (resident)
                    cspec((1, d_inner_p)),                           # b1
                    cspec((d_inner_p, d_hid_p)),                     # W2^T (resident)
                    cspec((1, d_hid_p)),                             # b2
                    cspec((1, d_hid_p)),                             # LN scale
                    cspec((1, d_hid_p)),                             # LN bias
                ],
                out_specs=pl.BlockSpec((rb, d_hid_p), lambda i: (i, 0)),
            ),
            compiler_params=pltpu.CompilerParams(
                dimension_semantics=("parallel",),   # v7x: shard row blocks across both TCs
                vmem_limit_bytes=vmem_limit,
            ),
            cost_estimate=cost,
        )(x_flat, w1t, b1r, w2t, b2r, a2r, blr)

    try:
        out_flat = _call(True)
    except Exception:
        # pl.Buffered(1) not accepted by this JAX build: fall back to default buffering.
        out_flat = _call(False)

    return out_flat[:N, :d_hid].reshape(B, L, d_hid)


def _reference(x, w1, b1, w2, b2, a2, bln, eps=0.001):
    """Pure-JAX mirror of the PyTorch forward (eval-mode dropout)."""
    h = jax.nn.relu(jnp.einsum("bld,fd->blf", x, w1) + b1)   # Conv1d k=1 == linear
    y = jnp.einsum("blf,df->bld", h, w2) + b2
    z = y + x
    if z.shape[1] == 1:
        return z
    mu = jnp.mean(z, axis=-1, keepdims=True)
    sigma = jnp.std(z, axis=-1, keepdims=True, ddof=1)        # torch.std: unbiased
    ln = (z - mu) / (sigma + eps)
    return ln * a2 + bln


if __name__ == "__main__":
    # Small shapes: batch=2, seq=8, d_hid=128 (lane-dense), d_inner=256.
    B, L, D, Dh = 2, 8, 128, 256
    key = jax.random.PRNGKey(0)
    kx, k1, kb1, k2, kb2, ka, kb = jax.random.split(key, 7)

    x = jax.random.normal(kx, (B, L, D), dtype=jnp.float32)
    w1 = jax.random.normal(k1, (Dh, D), dtype=jnp.float32) * 0.1
    b1 = jax.random.normal(kb1, (Dh,), dtype=jnp.float32) * 0.1
    w2 = jax.random.normal(k2, (D, Dh), dtype=jnp.float32) * 0.1
    b2 = jax.random.normal(kb2, (D,), dtype=jnp.float32) * 0.1
    a2 = 1.0 + 0.1 * jax.random.normal(ka, (D,), dtype=jnp.float32)
    bln = 0.1 * jax.random.normal(kb, (D,), dtype=jnp.float32)

    # Default (f32 matmul) path, strict tolerance.
    out = jax.block_until_ready(positionwise_feed_forward(x, w1, b1, w2, b2, a2, bln))
    ref = _reference(x, w1, b1, w2, b2, a2, bln)
    assert out.shape == (B, L, D)
    assert jnp.allclose(out, ref, atol=1e-4, rtol=1e-4), "mismatch vs reference"

    # L == 1 path (LayerNormalization skipped).
    x1 = x[:, :1, :]
    out1 = jax.block_until_ready(positionwise_feed_forward(x1, w1, b1, w2, b2, a2, bln))
    ref1 = _reference(x1, w1, b1, w2, b2, a2, bln)
    assert jnp.allclose(out1, ref1, atol=1e-4, rtol=1e-4), "mismatch vs reference (L==1)"

    # bf16 MXU path (f32 accumulation) + approx reciprocal: loose tolerance.
    outb = jax.block_until_ready(positionwise_feed_forward(
        x, w1, b1, w2, b2, a2, bln, matmul_dtype=jnp.bfloat16, approx_recip=True))
    assert jnp.allclose(outb, ref, atol=1e-1, rtol=1e-1), "mismatch vs reference (bf16)"

    # Non-128-multiple dims exercise the feature-padding + masked-LN path.
    Do, Dho, Lo = 96, 160, 5
    xo = jax.random.normal(kx, (B, Lo, Do), dtype=jnp.float32)
    w1o = jax.random.normal(k1, (Dho, Do), dtype=jnp.float32) * 0.1
    b1o = jax.random.normal(kb1, (Dho,), dtype=jnp.float32) * 0.1
    w2o = jax.random.normal(k2, (Do, Dho), dtype=jnp.float32) * 0.1
    b2o = jax.random.normal(kb2, (Do,), dtype=jnp.float32) * 0.1
    a2o = 1.0 + 0.1 * jax.random.normal(ka, (Do,), dtype=jnp.float32)
    blno = 0.1 * jax.random.normal(kb, (Do,), dtype=jnp.float32)
    outo = jax.block_until_ready(positionwise_feed_forward(xo, w1o, b1o, w2o, b2o, a2o, blno))
    refo = _reference(xo, w1o, b1o, w2o, b2o, a2o, blno)
    assert jnp.allclose(outo, refo, atol=1e-4, rtol=1e-4), "mismatch vs reference (odd dims)"

    print("KERNEL_OK")
</pallas_src>

<mosaic_0001>
module attributes {stable_mosaic.version = 11 : i64} {
  func.func @_pwff_kernel(%arg0: i32, %arg1: memref<16x128xf32, #tpu.memory_space<vmem>>, %arg2: memref<128x256xf32, #tpu.memory_space<vmem>>, %arg3: memref<1x256xf32, #tpu.memory_space<vmem>>, %arg4: memref<256x128xf32, #tpu.memory_space<vmem>>, %arg5: memref<1x128xf32, #tpu.memory_space<vmem>>, %arg6: memref<1x128xf32, #tpu.memory_space<vmem>>, %arg7: memref<1x128xf32, #tpu.memory_space<vmem>>, %arg8: memref<16x128xf32, #tpu.memory_space<vmem>>) attributes {dimension_semantics = [#tpu.dimension_semantics<parallel>], iteration_bounds = array<i64: 1>, scalar_prefetch = 0 : i64, scratch_operands = 0 : i64, tpu.core_type = #tpu.core_type<tc>, window_params = [{transform_indices = @transform_0, window_bounds = array<i64: 16, 128>}, {pipeline_mode = #tpu.pipeline_mode<synchronous>, transform_indices = @transform_1, window_bounds = array<i64: 128, 256>}, {pipeline_mode = #tpu.pipeline_mode<synchronous>, transform_indices = @transform_2, window_bounds = array<i64: 1, 256>}, {pipeline_mode = #tpu.pipeline_mode<synchronous>, transform_indices = @transform_3, window_bounds = array<i64: 256, 128>}, {pipeline_mode = #tpu.pipeline_mode<synchronous>, transform_indices = @transform_4, window_bounds = array<i64: 1, 128>}, {pipeline_mode = #tpu.pipeline_mode<synchronous>, transform_indices = @transform_5, window_bounds = array<i64: 1, 128>}, {pipeline_mode = #tpu.pipeline_mode<synchronous>, transform_indices = @transform_6, window_bounds = array<i64: 1, 128>}, {transform_indices = @transform_7, window_bounds = array<i64: 16, 128>}]} {
    %c0 = arith.constant 0 : index
    %c0_0 = arith.constant 0 : index
    %0 = vector.load %arg1[%c0, %c0_0] : memref<16x128xf32, #tpu.memory_space<vmem>>, vector<16x128xf32>
    %c0_1 = arith.constant 0 : index
    %c0_2 = arith.constant 0 : index
    %1 = vector.load %arg2[%c0_1, %c0_2] : memref<128x256xf32, #tpu.memory_space<vmem>>, vector<128x256xf32>
    %c0_3 = arith.constant 0 : index
    %c0_4 = arith.constant 0 : index
    %2 = vector.load %arg4[%c0_3, %c0_4] : memref<256x128xf32, #tpu.memory_space<vmem>>, vector<256x128xf32>
    %cst = arith.constant dense<0.000000e+00> : vector<16x256xf32>
    %3 = tpu.matmul %0, %1, %cst {dimension_numbers = #tpu.dot_dimension_numbers<[1], [0], [0], [1], [0, 0, 1, 1], [], []>} : vector<16x128xf32>, vector<128x256xf32>, vector<16x256xf32> -> vector<16x256xf32>
    %c0_5 = arith.constant 0 : index
    %c0_6 = arith.constant 0 : index
    %4 = vector.load %arg3[%c0_5, %c0_6] : memref<1x256xf32, #tpu.memory_space<vmem>>, vector<1x256xf32>
    %5 = vector.broadcast %4 : vector<1x256xf32> to vector<16x256xf32>
    %6 = arith.addf %3, %5 : vector<16x256xf32>
    %cst_7 = arith.constant 0.000000e+00 : f32
    %7 = vector.broadcast %cst_7 : f32 to vector<16x256xf32>
    %8 = arith.maximumf %6, %7 : vector<16x256xf32>
    %cst_8 = arith.constant dense<0.000000e+00> : vector<16x128xf32>
    %9 = tpu.matmul %8, %2, %cst_8 {dimension_numbers = #tpu.dot_dimension_numbers<[1], [0], [0], [1], [0, 0, 1, 1], [], []>} : vector<16x256xf32>, vector<256x128xf32>, vector<16x128xf32> -> vector<16x128xf32>
    %c0_9 = arith.constant 0 : index
    %c0_10 = arith.constant 0 : index
    %10 = vector.load %arg5[%c0_9, %c0_10] : memref<1x128xf32, #tpu.memory_space<vmem>>, vector<1x128xf32>
    %11 = vector.broadcast %10 : vector<1x128xf32> to vector<16x128xf32>
    %12 = arith.addf %9, %11 : vector<16x128xf32>
    %13 = arith.addf %12, %0 : vector<16x128xf32>
    %cst_11 = arith.constant dense<0.000000e+00> : vector<16xf32>
    %14 = vector.multi_reduction <add>, %13, %cst_11 [1] : vector<16x128xf32> to vector<16xf32>
    %15 = vector.shape_cast %14 : vector<16xf32> to vector<16x1xf32>
    %cst_12 = arith.constant 1.280000e+02 : f32
    %16 = vector.broadcast %cst_12 : f32 to vector<16x1xf32>
    %17 = arith.divf %15, %16 : vector<16x1xf32>
    %18 = vector.broadcast %17 : vector<16x1xf32> to vector<16x128xf32>
    %19 = arith.subf %13, %18 : vector<16x128xf32>
    %20 = arith.mulf %19, %19 : vector<16x128xf32>
    %cst_13 = arith.constant dense<0.000000e+00> : vector<16xf32>
    %21 = vector.multi_reduction <add>, %20, %cst_13 [1] : vector<16x128xf32> to vector<16xf32>
    %22 = vector.shape_cast %21 : vector<16xf32> to vector<16x1xf32>
    %cst_14 = arith.constant 0.00787401571 : f32
    %23 = vector.broadcast %cst_14 : f32 to vector<16x1xf32>
    %24 = arith.mulf %22, %23 : vector<16x1xf32>
    %25 = math.sqrt %24 : vector<16x1xf32>
    %cst_15 = arith.constant 1.000000e-03 : f32
    %26 = vector.broadcast %cst_15 : f32 to vector<16x1xf32>
    %27 = arith.addf %25, %26 : vector<16x1xf32>
    %cst_16 = arith.constant 1.000000e+00 : f32
    %28 = vector.broadcast %cst_16 : f32 to vector<16x1xf32>
    %29 = arith.divf %28, %27 : vector<16x1xf32>
    %30 = vector.broadcast %29 : vector<16x1xf32> to vector<16x128xf32>
    %31 = arith.mulf %19, %30 : vector<16x128xf32>
    %c0_17 = arith.constant 0 : index
    %c0_18 = arith.constant 0 : index
    %32 = vector.load %arg6[%c0_17, %c0_18] : memref<1x128xf32, #tpu.memory_space<vmem>>, vector<1x128xf32>
    %33 = vector.broadcast %32 : vector<1x128xf32> to vector<16x128xf32>
    %34 = arith.mulf %31, %33 : vector<16x128xf32>
    %c0_19 = arith.constant 0 : index
    %c0_20 = arith.constant 0 : index
    %35 = vector.load %arg7[%c0_19, %c0_20] : memref<1x128xf32, #tpu.memory_space<vmem>>, vector<1x128xf32>
    %36 = vector.broadcast %35 : vector<1x128xf32> to vector<16x128xf32>
    %37 = arith.addf %34, %36 : vector<16x128xf32>
    %c0_21 = arith.constant 0 : index
    %c0_22 = arith.constant 0 : index
    %38 = vector.load %arg8[%c0_21, %c0_22] : memref<16x128xf32, #tpu.memory_space<vmem>>, vector<16x128xf32>
    tpu.vector_store %arg8[%c0_21, %c0_22], %37 {strides = array<i32>} : memref<16x128xf32, #tpu.memory_space<vmem>>, vector<16x128xf32>,
    return
  }
  func.func @transform_0(%arg0: i32) -> (i32, i32) {
    %c0_i32 = arith.constant 0 : i32
    %c0_i32_0 = arith.constant 0 : i32
    return %arg0, %c0_i32 : i32, i32
  }
  func.func @transform_1(%arg0: i32) -> (i32, i32) {
    %c0_i32 = arith.constant 0 : i32
    %c0_i32_0 = arith.constant 0 : i32
    %c0_i32_1 = arith.constant 0 : i32
    return %c0_i32, %c0_i32_0 : i32, i32
  }
  func.func @transform_2(%arg0: i32) -> (i32, i32) {
    %c0_i32 = arith.constant 0 : i32
    %c0_i32_0 = arith.constant 0 : i32
    %c0_i32_1 = arith.constant 0 : i32
    return %c0_i32, %c0_i32_0 : i32, i32
  }
  func.func @transform_3(%arg0: i32) -> (i32, i32) {
    %c0_i32 = arith.constant 0 : i32
    %c0_i32_0 = arith.constant 0 : i32
    %c0_i32_1 = arith.constant 0 : i32
    return %c0_i32, %c0_i32_0 : i32, i32
  }
  func.func @transform_4(%arg0: i32) -> (i32, i32) {
    %c0_i32 = arith.constant 0 : i32
    %c0_i32_0 = arith.constant 0 : i32
    %c0_i32_1 = arith.constant 0 : i32
    return %c0_i32, %c0_i32_0 : i32, i32
  }
  func.func @transform_5(%arg0: i32) -> (i32, i32) {
    %c0_i32 = arith.constant 0 : i32
    %c0_i32_0 = arith.constant 0 : i32
    %c0_i32_1 = arith.constant 0 : i32
    return %c0_i32, %c0_i32_0 : i32, i32
  }
  func.func @transform_6(%arg0: i32) -> (i32, i32) {
    %c0_i32 = arith.constant 0 : i32
    %c0_i32_0 = arith.constant 0 : i32
    %c0_i32_1 = arith.constant 0 : i32
    return %c0_i32, %c0_i32_0 : i32, i32
  }
  func.func @transform_7(%arg0: i32) -> (i32, i32) {
    %c0_i32 = arith.constant 0 : i32
    %c0_i32_0 = arith.constant 0 : i32
    return %arg0, %c0_i32 : i32, i32
  }
}

module attributes {stable_mosaic.version = 11 : i64} {
  func.func @_pwff_kernel(%arg0: i32, %arg1: memref<16x128xf32, #tpu.memory_space<vmem>>, %arg2: memref<128x256xf32, #tpu.memory_space<vmem>>, %arg3: memref<1x256xf32, #tpu.memory_space<vmem>>, %arg4: memref<256x128xf32, #tpu.memory_space<vmem>>, %arg5: memref<1x128xf32, #tpu.memory_space<vmem>>, %arg6: memref<1x128xf32, #tpu.memory_space<vmem>>, %arg7: memref<1x128xf32, #tpu.memory_space<vmem>>, %arg8: memref<16x128xf32, #tpu.memory_space<vmem>>) attributes {dimension_semantics = [#tpu.dimension_semantics<parallel>], iteration_bounds = array<i64: 1>, scalar_prefetch = 0 : i64, scratch_operands = 0 : i64, tpu.core_type = #tpu.core_type<tc>, window_params = [{transform_indices = @transform_0, window_bounds = array<i64: 16, 128>}, {pipeline_mode = #tpu.pipeline_mode<synchronous>, transform_indices = @transform_1, window_bounds = array<i64: 128, 256>}, {pipeline_mode = #tpu.pipeline_mode<synchronous>, transform_indices = @transform_2, window_bounds = array<i64: 1, 256>}, {pipeline_mode = #tpu.pipeline_mode<synchronous>, transform_indices = @transform_3, window_bounds = array<i64: 256, 128>}, {pipeline_mode = #tpu.pipeline_mode<synchronous>, transform_indices = @transform_4, window_bounds = array<i64: 1, 128>}, {pipeline_mode = #tpu.pipeline_mode<synchronous>, transform_indices = @transform_5, window_bounds = array<i64: 1, 128>}, {pipeline_mode = #tpu.pipeline_mode<synchronous>, transform_indices = @transform_6, window_bounds = array<i64: 1, 128>}, {transform_indices = @transform_7, window_bounds = array<i64: 16, 128>}]} {
    %c0 = arith.constant 0 : index
    %c0_0 = arith.constant 0 : index
    %0 = vector.load %arg1[%c0, %c0_0] : memref<16x128xf32, #tpu.memory_space<vmem>>, vector<16x128xf32>
    %c0_1 = arith.constant 0 : index
    %c0_2 = arith.constant 0 : index
    %1 = vector.load %arg2[%c0_1, %c0_2] : memref<128x256xf32, #tpu.memory_space<vmem>>, vector<128x256xf32>
    %c0_3 = arith.constant 0 : index
    %c0_4 = arith.constant 0 : index
    %2 = vector.load %arg4[%c0_3, %c0_4] : memref<256x128xf32, #tpu.memory_space<vmem>>, vector<256x128xf32>
    %cst = arith.constant dense<0.000000e+00> : vector<16x256xf32>
    %3 = tpu.matmul %0, %1, %cst {dimension_numbers = #tpu.dot_dimension_numbers<[1], [0], [0], [1], [0, 0, 1, 1], [], []>} : vector<16x128xf32>, vector<128x256xf32>, vector<16x256xf32> -> vector<16x256xf32>
    %c0_5 = arith.constant 0 : index
    %c0_6 = arith.constant 0 : index
    %4 = vector.load %arg3[%c0_5, %c0_6] : memref<1x256xf32, #tpu.memory_space<vmem>>, vector<1x256xf32>
    %5 = vector.broadcast %4 : vector<1x256xf32> to vector<16x256xf32>
    %6 = arith.addf %3, %5 : vector<16x256xf32>
    %cst_7 = arith.constant 0.000000e+00 : f32
    %7 = vector.broadcast %cst_7 : f32 to vector<16x256xf32>
    %8 = arith.maximumf %6, %7 : vector<16x256xf32>
    %cst_8 = arith.constant dense<0.000000e+00> : vector<16x128xf32>
    %9 = tpu.matmul %8, %2, %cst_8 {dimension_numbers = #tpu.dot_dimension_numbers<[1], [0], [0], [1], [0, 0, 1, 1], [], []>} : vector<16x256xf32>, vector<256x128xf32>, vector<16x128xf32> -> vector<16x128xf32>
    %c0_9 = arith.constant 0 : index
    %c0_10 = arith.constant 0 : index
    %10 = vector.load %arg5[%c0_9, %c0_10] : memref<1x128xf32, #tpu.memory_space<vmem>>, vector<1x128xf32>
    %11 = vector.broadcast %10 : vector<1x128xf32> to vector<16x128xf32>
    %12 = arith.addf %9, %11 : vector<16x128xf32>
    %13 = arith.addf %12, %0 : vector<16x128xf32>
    %cst_11 = arith.constant dense<0.000000e+00> : vector<16xf32>
    %14 = vector.multi_reduction <add>, %13, %cst_11 [1] : vector<16x128xf32> to vector<16xf32>
    %15 = vector.shape_cast %14 : vector<16xf32> to vector<16x1xf32>
    %cst_12 = arith.constant 1.280000e+02 : f32
    %16 = vector.broadcast %cst_12 : f32 to vector<16x1xf32>
    %17 = arith.divf %15, %16 : vector<16x1xf32>
    %18 = vector.broadcast %17 : vector<16x1xf32> to vector<16x128xf32>
    %19 = arith.subf %13, %18 : vector<16x128xf32>
    %20 = arith.mulf %19, %19 : vector<16x128xf32>
    %cst_13 = arith.constant dense<0.000000e+00> : vector<16xf32>
    %21 = vector.multi_reduction <add>, %20, %cst_13 [1] : vector<16x128xf32> to vector<16xf32>
    %22 = vector.shape_cast %21 : vector<16xf32> to vector<16x1xf32>
    %cst_14 = arith.constant 0.00787401571 : f32
    %23 = vector.broadcast %cst_14 : f32 to vector<16x1xf32>
    %24 = arith.mulf %22, %23 : vector<16x1xf32>
    %25 = math.sqrt %24 : vector<16x1xf32>
    %cst_15 = arith.constant 1.000000e-03 : f32
    %26 = vector.broadcast %cst_15 : f32 to vector<16x1xf32>
    %27 = arith.addf %25, %26 : vector<16x1xf32>
    %cst_16 = arith.constant 1.000000e+00 : f32
    %28 = vector.broadcast %cst_16 : f32 to vector<16x1xf32>
    %29 = arith.divf %28, %27 : vector<16x1xf32>
    %30 = vector.broadcast %29 : vector<16x1xf32> to vector<16x128xf32>
    %31 = arith.mulf %19, %30 : vector<16x128xf32>
    %c0_17 = arith.constant 0 : index
    %c0_18 = arith.constant 0 : index
    %32 = vector.load %arg6[%c0_17, %c0_18] : memref<1x128xf32, #tpu.memory_space<vmem>>, vector<1x128xf32>
    %33 = vector.broadcast %32 : vector<1x128xf32> to vector<16x128xf32>
    %34 = arith.mulf %31, %33 : vector<16x128xf32>
    %c0_19 = arith.constant 0 : index
    %c0_20 = arith.constant 0 : index
    %35 = vector.load %arg7[%c0_19, %c0_20] : memref<1x128xf32, #tpu.memory_space<vmem>>, vector<1x128xf32>
    %36 = vector.broadcast %35 : vector<1x128xf32> to vector<16x128xf32>
    %37 = arith.addf %34, %36 : vector<16x128xf32>
    %c0_21 = arith.constant 0 : index
    %c0_22 = arith.constant 0 : index
    %38 = vector.load %arg8[%c0_21, %c0_22] : memref<16x128xf32, #tpu.memory_space<vmem>>, vector<16x128xf32>
    tpu.vector_store %arg8[%c0_21, %c0_22], %37 {strides = array<i32>} : memref<16x128xf32, #tpu.memory_space<vmem>>, vector<16x128xf32>,
    return
  }
  func.func @transform_0(%arg0: i32) -> (i32, i32) {
    %c0_i32 = arith.constant 0 : i32
    %c0_i32_0 = arith.constant 0 : i32
    return %arg0, %c0_i32 : i32, i32
  }
  func.func @transform_1(%arg0: i32) -> (i32, i32) {
    %c0_i32 = arith.constant 0 : i32
    %c0_i32_0 = arith.constant 0 : i32
    %c0_i32_1 = arith.constant 0 : i32
    return %c0_i32, %c0_i32_0 : i32, i32
  }
  func.func @transform_2(%arg0: i32) -> (i32, i32) {
    %c0_i32 = arith.constant 0 : i32
    %c0_i32_0 = arith.constant 0 : i32
    %c0_i32_1 = arith.constant 0 : i32
    return %c0_i32, %c0_i32_0 : i32, i32
  }
  func.func @transform_3(%arg0: i32) -> (i32, i32) {
    %c0_i32 = arith.constant 0 : i32
    %c0_i32_0 = arith.constant 0 : i32
    %c0_i32_1 = arith.constant 0 : i32
    return %c0_i32, %c0_i32_0 : i32, i32
  }
  func.func @transform_4(%arg0: i32) -> (i32, i32) {
    %c0_i32 = arith.constant 0 : i32
    %c0_i32_0 = arith.constant 0 : i32
    %c0_i32_1 = arith.constant 0 : i32
    return %c0_i32, %c0_i32_0 : i32, i32
  }
  func.func @transform_5(%arg0: i32) -> (i32, i32) {
    %c0_i32 = arith.constant 0 : i32
    %c0_i32_0 = arith.constant 0 : i32
    %c0_i32_1 = arith.constant 0 : i32
    return %c0_i32, %c0_i32_0 : i32, i32
  }
  func.func @transform_6(%arg0: i32) -> (i32, i32) {
    %c0_i32 = arith.constant 0 : i32
    %c0_i32_0 = arith.constant 0 : i32
    %c0_i32_1 = arith.constant 0 : i32
    return %c0_i32, %c0_i32_0 : i32, i32
  }
  func.func @transform_7(%arg0: i32) -> (i32, i32) {
    %c0_i32 = arith.constant 0 : i32
    %c0_i32_0 = arith.constant 0 : i32
    return %arg0, %c0_i32 : i32, i32
  }
}

</mosaic_0001>

<llo_original>
// kernel: tpu_custom_call.1
$region0: #{tpu_custom_call.1}
  #allocation0 [shape = 'u32[]', space=smem, size = 0x4, offset = 0x4, fixed_abs, tag = 'smem constant byte address 0x4 - core index']
  #allocation1 [shape = 'u32[144,128]{1,0:T(1,128)}', space=vmem, size = 0x12000, scoped, tag = 'internal scratch']
  %s0 = inlined_call_operand.hbm [shape: f32[16,128], index: 0, kind: input, shape index: {}]
  %s1 = inlined_call_operand.hbm [shape: f32[128,256], index: 1, kind: input, shape index: {}]
  %s2 = inlined_call_operand.vmem [shape: f32[1,256], index: 2, kind: input, shape index: {}]
  %s3 = inlined_call_operand.hbm [shape: f32[256,128], index: 3, kind: input, shape index: {}]
  %s4 = inlined_call_operand.vmem [shape: f32[1,128], index: 4, kind: input, shape index: {}]
  %s5 = inlined_call_operand.vmem [shape: f32[1,128], index: 5, kind: input, shape index: {}]
  %s6 = inlined_call_operand.vmem [shape: f32[1,128], index: 6, kind: input, shape index: {}]
  %s7 = inlined_call_operand.hbm [shape: f32[16,128], index: 7, kind: output, shape index: {}]
  %s8 = sld [smem:[#allocation0]]
  $region50: #{tpu_custom_call.1} parent=0
    _
  %s10 = ssub.s32 1, %s8
  %s11 = scalar_select 0, %s10, %s8
  $region1: #{tpu_custom_call.1} parent=0
    #allocation2 [shape = 'u8[8192]{0}', space=vmem, size = 0x2000, scoped, tag = 'input window, operand 0, single buffered']
    #allocation3 [shape = 's32[1]{0}', space=sflag, size = 0x4, scoped, tag = 'scoped memory for tpu_custom_call.1']
    #allocation4 [shape = 's32[1]{0}', space=sflag, size = 0x4, scoped, tag = 'scoped memory for tpu_custom_call.1']
    #allocation5 [shape = 'u8[131072]{0}', space=vmem, size = 0x20000, scoped, tag = 'input window, operand 1, single buffered']
    #allocation6 [shape = 's32[1]{0}', space=sflag, size = 0x4, scoped, tag = 'scoped memory for tpu_custom_call.1']
    #allocation7 [shape = 'u8[131072]{0}', space=vmem, size = 0x20000, scoped, tag = 'input window, operand 3, single buffered']
    #allocation8 [shape = 'u8[8192]{0}', space=vmem, size = 0x2000, scoped, tag = 'output window, operand 0, single buffered']
    %12 = vsyncpa [#allocation3], 0
    %13 = vsyncpa [#allocation6], 0
    %14 = vsyncpa [#allocation4], 0
    // Predicated region
    $region2: #{tpu_custom_call.1} parent=1 // pred_check
      _
    $region3: #{tpu_custom_call.1} parent=1 // pred_check_branch
      %16 = sbr.rel (0) target = $region5
    $region4: #{tpu_custom_call.1} parent=1 // pred_region
      %s18 = ssub.s32 256, 256
      %19 = vsyncadd [#allocation3], %s18
      %s20 = sshll.u32 [#allocation2], 4
      %s21 = int_to_ptr.vmem [resolvable:$true] %s20
      %26 = dma.hbm_to_vmem [thread:$0]  %s0, 256, %s21, [#allocation3], 128, 128, 8
    $region5: #{tpu_custom_call.1} parent=1 // pred_fallthru
      _
    // Predicated region
    $region6: #{tpu_custom_call.1} parent=1 // pred_check
      _
    $region7: #{tpu_custom_call.1} parent=1 // pred_check_branch
      %28 = sbr.rel (0) target = $region9
    $region8: #{tpu_custom_call.1} parent=1 // pred_region
      %s30 = ssub.s32 4096, 4096
      %31 = vsyncadd [#allocation6], %s30
      %s32 = sshll.u32 [#allocation5], 4
      %s33 = int_to_ptr.vmem [resolvable:$true] %s32
      %38 = dma.hbm_to_vmem [thread:$0]  %s1, 4096, %s33, [#allocation6], 256, 256, 16
    $region9: #{tpu_custom_call.1} parent=1 // pred_fallthru
      _
    // Predicated region
    $region10: #{tpu_custom_call.1} parent=1 // pred_check
      _
    $region11: #{tpu_custom_call.1} parent=1 // pred_check_branch
      %40 = sbr.rel (0) target = $region13
    $region12: #{tpu_custom_call.1} parent=1 // pred_region
      _
    $region13: #{tpu_custom_call.1} parent=1 // pred_fallthru
      _
    // Predicated region
    $region14: #{tpu_custom_call.1} parent=1 // pred_check
      _
    $region15: #{tpu_custom_call.1} parent=1 // pred_check_branch
      %42 = sbr.rel (0) target = $region17
    $region16: #{tpu_custom_call.1} parent=1 // pred_region
      %s44 = ssub.s32 4096, 4096
      %45 = vsyncadd [#allocation6], %s44
      %s46 = sshll.u32 [#allocation7], 4
      %s47 = int_to_ptr.vmem [resolvable:$true] %s46
      %52 = dma.hbm_to_vmem [thread:$0]  %s3, 4096, %s47, [#allocation6], 128, 128, 8
    $region17: #{tpu_custom_call.1} parent=1 // pred_fallthru
      _
    // Predicated region
    $region18: #{tpu_custom_call.1} parent=1 // pred_check
      _
    $region19: #{tpu_custom_call.1} parent=1 // pred_check_branch
      %54 = sbr.rel (0) target = $region21
    $region20: #{tpu_custom_call.1} parent=1 // pred_region
      _
    $region21: #{tpu_custom_call.1} parent=1 // pred_fallthru
      _
    // Predicated region
    $region22: #{tpu_custom_call.1} parent=1 // pred_check
      _
    $region23: #{tpu_custom_call.1} parent=1 // pred_check_branch
      %56 = sbr.rel (0) target = $region25
    $region24: #{tpu_custom_call.1} parent=1 // pred_region
      _
    $region25: #{tpu_custom_call.1} parent=1 // pred_fallthru
      _
    // Predicated region
    $region26: #{tpu_custom_call.1} parent=1 // pred_check
      _
    $region27: #{tpu_custom_call.1} parent=1 // pred_check_branch
      %58 = sbr.rel (0) target = $region29
    $region28: #{tpu_custom_call.1} parent=1 // pred_region
      _
    $region29: #{tpu_custom_call.1} parent=1 // pred_fallthru
      _
    // Predicated region
    $region30: #{tpu_custom_call.1} parent=1 // pred_check
      _
    $region31: #{tpu_custom_call.1} parent=1 // pred_check_branch
      %60 = sbr.rel (0) target = $region33
    $region32: #{tpu_custom_call.1} parent=1 // pred_region
      %61 = dma.done [#allocation3], 256
    $region33: #{tpu_custom_call.1} parent=1 // pred_fallthru
      _
    // Predicated region
    $region34: #{tpu_custom_call.1} parent=1 // pred_check
      _
    $region35: #{tpu_custom_call.1} parent=1 // pred_check_branch
      %63 = sbr.rel (0) target = $region37
    $region36: #{tpu_custom_call.1} parent=1 // pred_region
      %64 = dma.done [#allocation6], 4096
    $region37: #{tpu_custom_call.1} parent=1 // pred_fallthru
      _
    // Predicated region
    $region38: #{tpu_custom_call.1} parent=1 // pred_check
      _
    $region39: #{tpu_custom_call.1} parent=1 // pred_check_branch
      %66 = sbr.rel (0) target = $region41
    $region40: #{tpu_custom_call.1} parent=1 // pred_region
      %67 = dma.done [#allocation6], 4096
    $region41: #{tpu_custom_call.1} parent=1 // pred_fallthru
      _
    %v68 = vld [vmem:[#allocation2] sm:$0xff]
    %v69 = vld [vmem:[#allocation2 + $0x8] sm:$0xff]
    %v70 = vld [vmem:[#allocation5] sm:$0xff]
    %v71 = vld [vmem:[#allocation5 + $0x8] sm:$0xff]
    %v72 = vld [vmem:[#allocation5 + $0x10] sm:$0xff]
    %v73 = vld [vmem:[#allocation5 + $0x18] sm:$0xff]
    %v74 = vld [vmem:[#allocation5 + $0x20] sm:$0xff]
    %v75 = vld [vmem:[#allocation5 + $0x28] sm:$0xff]
    %v76 = vld [vmem:[#allocation5 + $0x30] sm:$0xff]
    %v77 = vld [vmem:[#allocation5 + $0x38] sm:$0xff]
    %v78 = vld [vmem:[#allocation5 + $0x40] sm:$0xff]
    %v79 = vld [vmem:[#allocation5 + $0x48] sm:$0xff]
    %v80 = vld [vmem:[#allocation5 + $0x50] sm:$0xff]
    %v81 = vld [vmem:[#allocation5 + $0x58] sm:$0xff]
    %v82 = vld [vmem:[#allocation5 + $0x60] sm:$0xff]
    %v83 = vld [vmem:[#allocation5 + $0x68] sm:$0xff]
    %v84 = vld [vmem:[#allocation5 + $0x70] sm:$0xff]
    %v85 = vld [vmem:[#allocation5 + $0x78] sm:$0xff]
    %v86 = vld [vmem:[#allocation5 + $0x80] sm:$0xff]
    %v87 = vld [vmem:[#allocation5 + $0x88] sm:$0xff]
    %v88 = vld [vmem:[#allocation5 + $0x90] sm:$0xff]
    %v89 = vld [vmem:[#allocation5 + $0x98] sm:$0xff]
    %v90 = vld [vmem:[#allocation5 + $0xa0] sm:$0xff]
    %v91 = vld [vmem:[#allocation5 + $0xa8] sm:$0xff]
    %v92 = vld [vmem:[#allocation5 + $0xb0] sm:$0xff]
    %v93 = vld [vmem:[#allocation5 + $0xb8] sm:$0xff]
    %v94 = vld [vmem:[#allocation5 + $0xc0] sm:$0xff]
    %v95 = vld [vmem:[#allocation5 + $0xc8] sm:$0xff]
    %v96 = vld [vmem:[#allocation5 + $0xd0] sm:$0xff]
    %v97 = vld [vmem:[#allocation5 + $0xd8] sm:$0xff]
    %v98 = vld [vmem:[#allocation5 + $0xe0] sm:$0xff]
    %v99 = vld [vmem:[#allocation5 + $0xe8] sm:$0xff]
    %v100 = vld [vmem:[#allocation5 + $0xf0] sm:$0xff]
    %v101 = vld [vmem:[#allocation5 + $0xf8] sm:$0xff]
    %v102 = vld [vmem:[#allocation7] sm:$0xff]
    %v103 = vld [vmem:[#allocation7 + $0x8] sm:$0xff]
    %v104 = vld [vmem:[#allocation7 + $0x10] sm:$0xff]
    %v105 = vld [vmem:[#allocation7 + $0x18] sm:$0xff]
    %v106 = vld [vmem:[#allocation7 + $0x20] sm:$0xff]
    %v107 = vld [vmem:[#allocation7 + $0x28] sm:$0xff]
    %v108 = vld [vmem:[#allocation7 + $0x30] sm:$0xff]
    %v109 = vld [vmem:[#allocation7 + $0x38] sm:$0xff]
    %v110 = vld [vmem:[#allocation7 + $0x40] sm:$0xff]
    %v111 = vld [vmem:[#allocation7 + $0x48] sm:$0xff]
    %v112 = vld [vmem:[#allocation7 + $0x50] sm:$0xff]
    %v113 = vld [vmem:[#allocation7 + $0x58] sm:$0xff]
    %v114 = vld [vmem:[#allocation7 + $0x60] sm:$0xff]
    %v115 = vld [vmem:[#allocation7 + $0x68] sm:$0xff]
    %v116 = vld [vmem:[#allocation7 + $0x70] sm:$0xff]
    %v117 = vld [vmem:[#allocation7 + $0x78] sm:$0xff]
    %v118 = vld [vmem:[#allocation7 + $0x80] sm:$0xff]
    %v119 = vld [vmem:[#allocation7 + $0x88] sm:$0xff]
    %v120 = vld [vmem:[#allocation7 + $0x90] sm:$0xff]
    %v121 = vld [vmem:[#allocation7 + $0x98] sm:$0xff]
    %v122 = vld [vmem:[#allocation7 + $0xa0] sm:$0xff]
    %v123 = vld [vmem:[#allocation7 + $0xa8] sm:$0xff]
    %v124 = vld [vmem:[#allocation7 + $0xb0] sm:$0xff]
    %v125 = vld [vmem:[#allocation7 + $0xb8] sm:$0xff]
    %v126 = vld [vmem:[#allocation7 + $0xc0] sm:$0xff]
    %v127 = vld [vmem:[#allocation7 + $0xc8] sm:$0xff]
    %v128 = vld [vmem:[#allocation7 + $0xd0] sm:$0xff]
    %v129 = vld [vmem:[#allocation7 + $0xd8] sm:$0xff]
    %v130 = vld [vmem:[#allocation7 + $0xe0] sm:$0xff]
    %v131 = vld [vmem:[#allocation7 + $0xe8] sm:$0xff]
    %v132 = vld [vmem:[#allocation7 + $0xf0] sm:$0xff]
    %v133 = vld [vmem:[#allocation7 + $0xf8] sm:$0xff]
    %v134 = vld [vmem:[%s2] sm:$0x3]
    %v136 = vlaneseq
    %v137 = vshrl.u32 %v136, 7
    %v138 = vsub.s32 0, %v137
    %v139 = vrot.slane %v134, %v138
    %v140 = vlaneseq
    %v141 = vshrl.u32 %v140, 7
    %v142 = vsub.s32 1, %v141
    %v143 = vrot.slane %v134, %v142
    %146 = vmatprep.subr.mxu0 %v71
    %147 = vmatpush1.msra.mxu0 %v70
    %148 = vmatprep.subr.mxu0 %v73
    %149 = vmatpush1.msra.mxu0 %v72
    %150 = vmatprep.subr.mxu0 %v75
    %151 = vmatpush1.msra.mxu0 %v74
    %152 = vmatprep.subr.mxu0 %v77
    %153 = vmatpush1.msra.mxu0 %v76
    %154 = vmatprep.subr.mxu0 %v79
    %155 = vmatpush1.msra.mxu0 %v78
    %156 = vmatprep.subr.mxu0 %v81
    %157 = vmatpush1.msra.mxu0 %v80
    %158 = vmatprep.subr.mxu0 %v83
    %159 = vmatpush1.msra.mxu0 %v82
    %160 = vmatprep.subr.mxu0 %v85
    %161 = vmatpush1.msra.mxu0 %v84
    %162 = vmatprep.subr.mxu0 %v87
    %163 = vmatpush1.msra.mxu0 %v86
    %164 = vmatprep.subr.mxu0 %v89
    %165 = vmatpush1.msra.mxu0 %v88
    %166 = vmatprep.subr.mxu0 %v91
    %167 = vmatpush1.msra.mxu0 %v90
    %168 = vmatprep.subr.mxu0 %v93
    %169 = vmatpush1.msra.mxu0 %v92
    %170 = vmatprep.subr.mxu0 %v95
    %171 = vmatpush1.msra.mxu0 %v94
    %172 = vmatprep.subr.mxu0 %v97
    %173 = vmatpush1.msra.mxu0 %v96
    %174 = vmatprep.subr.mxu0 %v99
    %175 = vmatpush1.msra.mxu0 %v98
    %176 = vmatprep.subr.mxu0 %v101
    %177 = vmatpush1.msra.mxu0 %v100
    %178 = vmatprep.subr.mxu0 0.0
    %179 = vmatpush1.msra.mxu0 0.0
    %180 = vmatprep.subr.mxu0 0.0
    %181 = vmatpush1.msra.mxu0 0.0
    %182 = vmatprep.subr.mxu0 0.0
    %183 = vmatpush1.msra.mxu0 0.0
    %184 = vmatprep.subr.mxu0 0.0
    %185 = vmatpush1.msra.mxu0 0.0
    %186 = vmatprep.subr.mxu0 0.0
    %187 = vmatpush1.msra.mxu0 0.0
    %188 = vmatprep.subr.mxu0 0.0
    %189 = vmatpush1.msra.mxu0 0.0
    %190 = vmatprep.subr.mxu0 0.0
    %191 = vmatpush1.msra.mxu0 0.0
    %192 = vmatprep.subr.mxu0 0.0
    %193 = vmatpush1.msra.mxu0 0.0
    %194 = vmatprep.subr.mxu0 0.0
    %195 = vmatpush1.msra.mxu0 0.0
    %196 = vmatprep.subr.mxu0 0.0
    %197 = vmatpush1.msra.mxu0 0.0
    %198 = vmatprep.subr.mxu0 0.0
    %199 = vmatpush1.msra.mxu0 0.0
    %200 = vmatprep.subr.mxu0 0.0
    %201 = vmatpush1.msra.mxu0 0.0
    %202 = vmatprep.subr.mxu0 0.0
    %203 = vmatpush1.msra.mxu0 0.0
    %204 = vmatprep.subr.mxu0 0.0
    %205 = vmatpush1.msra.mxu0 0.0
    %206 = vmatprep.subr.mxu0 0.0
    %207 = vmatpush1.msra.mxu0 0.0
    %208 = vmatprep.subr.mxu0 0.0
    %209 = vmatpush1.msra.mxu0 0.0
    %210 = vmatprep.mubr.f32.mxu0 0.0
    %211 = vmatmul.mubr.f32.gmra.mrb[0].mxu0 %v68
    %v212 = vpop.f32.mrb[0].mxu0
    %v213 = vadd.f32 %v139, %v212
    %v214 = vpop.f32.mrb[0].mxu0
    %v215 = vadd.f32 %v143, %v214
    %216 = vmatprep.mubr.f32.mxu0 0.0
    %217 = vmatmul.mubr.f32.gmra.mrb[0].mxu0 %v69
    %v218 = vpop.f32.mrb[0].mxu0
    %v219 = vadd.f32 %v139, %v218
    %v220 = vpop.f32.mrb[0].mxu0
    %v221 = vadd.f32 %v143, %v220
    %222 = vdwg.mxu0
    %v223 = vmax.f32 %v213, 0.0
    %v224 = vmax.f32 %v215, 0.0
    %v225 = vmax.f32 %v219, 0.0
    %v226 = vmax.f32 %v221, 0.0
    %v227 = vld [vmem:[%s4] sm:$0x1]
    %v229 = vlaneseq
    %v230 = vshrl.u32 %v229, 7
    %v231 = vsub.s32 0, %v230
    %v232 = vrot.slane %v227, %v231
    %234 = vmatprep.subr.mxu0 0.0
    %235 = vmatpush1.msra.mxu0 %v102
    %236 = vmatprep.subr.mxu0 0.0
    %237 = vmatpush1.msra.mxu0 %v103
    %238 = vmatprep.subr.mxu0 0.0
    %239 = vmatpush1.msra.mxu0 %v104
    %240 = vmatprep.subr.mxu0 0.0
    %241 = vmatpush1.msra.mxu0 %v105
    %242 = vmatprep.subr.mxu0 0.0
    %243 = vmatpush1.msra.mxu0 %v106
    %244 = vmatprep.subr.mxu0 0.0
    %245 = vmatpush1.msra.mxu0 %v107
    %246 = vmatprep.subr.mxu0 0.0
    %247 = vmatpush1.msra.mxu0 %v108
    %248 = vmatprep.subr.mxu0 0.0
    %249 = vmatpush1.msra.mxu0 %v109
    %250 = vmatprep.subr.mxu0 0.0
    %251 = vmatpush1.msra.mxu0 %v110
    %252 = vmatprep.subr.mxu0 0.0
    %253 = vmatpush1.msra.mxu0 %v111
    %254 = vmatprep.subr.mxu0 0.0
    %255 = vmatpush1.msra.mxu0 %v112
    %256 = vmatprep.subr.mxu0 0.0
    %257 = vmatpush1.msra.mxu0 %v113
    %258 = vmatprep.subr.mxu0 0.0
    %259 = vmatpush1.msra.mxu0 %v114
    %260 = vmatprep.subr.mxu0 0.0
    %261 = vmatpush1.msra.mxu0 %v115
    %262 = vmatprep.subr.mxu0 0.0
    %263 = vmatpush1.msra.mxu0 %v116
    %264 = vmatprep.subr.mxu0 0.0
    %265 = vmatpush1.msra.mxu0 %v117
    %266 = vmatprep.subr.mxu0 0.0
    %267 = vmatpush1.msra.mxu0 %v118
    %268 = vmatprep.subr.mxu0 0.0
    %269 = vmatpush1.msra.mxu0 %v119
    %270 = vmatprep.subr.mxu0 0.0
    %271 = vmatpush1.msra.mxu0 %v120
    %272 = vmatprep.subr.mxu0 0.0
    %273 = vmatpush1.msra.mxu0 %v121
    %274 = vmatprep.subr.mxu0 0.0
    %275 = vmatpush1.msra.mxu0 %v122
    %276 = vmatprep.subr.mxu0 0.0
    %277 = vmatpush1.msra.mxu0 %v123
    %278 = vmatprep.subr.mxu0 0.0
    %279 = vmatpush1.msra.mxu0 %v124
    %280 = vmatprep.subr.mxu0 0.0
    %281 = vmatpush1.msra.mxu0 %v125
    %282 = vmatprep.subr.mxu0 0.0
    %283 = vmatpush1.msra.mxu0 %v126
    %284 = vmatprep.subr.mxu0 0.0
    %285 = vmatpush1.msra.mxu0 %v127
    %286 = vmatprep.subr.mxu0 0.0
    %287 = vmatpush1.msra.mxu0 %v128
    %288 = vmatprep.subr.mxu0 0.0
    %289 = vmatpush1.msra.mxu0 %v129
    %290 = vmatprep.subr.mxu0 0.0
    %291 = vmatpush1.msra.mxu0 %v130
    %292 = vmatprep.subr.mxu0 0.0
    %293 = vmatpush1.msra.mxu0 %v131
    %294 = vmatprep.subr.mxu0 0.0
    %295 = vmatpush1.msra.mxu0 %v132
    %296 = vmatprep.subr.mxu0 0.0
    %297 = vmatpush1.msra.mxu0 %v133
    %298 = vmatprep.mubr.f32.mxu0 %v224
    %299 = vmatmul.mubr.f32.gmra.mrb[0].mxu0 %v223
    %v300 = vpop.f32.mrb[0].mxu0
    %v301 = vadd.f32 %v232, %v300
    %v302 = vpop.f32.mrb[0].mxu0
    %303 = vmatprep.mubr.f32.mxu0 %v226
    %304 = vmatmul.mubr.f32.gmra.mrb[0].mxu0 %v225
    %v305 = vpop.f32.mrb[0].mxu0
    %v306 = vadd.f32 %v232, %v305
    %v307 = vpop.f32.mrb[0].mxu0
    %308 = vdwg.mxu0
    %v309 = vadd.f32 %v301, %v68
    %v310 = vadd.f32 %v306, %v69
    %311 = vadd.xlane.f32.xlu0 %v309
    %v312 = vpop.xlane.xlu0 %311
    %313 = vadd.xlane.f32.xlu0 %v310
    %v314 = vpop.xlane.xlu0 %313
    %v315 = vrcp.pop 128.0
    %v316 = vmul.f32 %v312, %v315
    %v317 = vmul.f32 %v314, %v315
    %v318 = vsub.f32 %v309, %v316
    %v319 = vsub.f32 %v310, %v317
    %v320 = vmul.f32 %v318, %v318
    %v321 = vmul.f32 %v319, %v319
    %322 = vadd.xlane.f32.xlu0 %v320
    %v323 = vpop.xlane.xlu0 %322
    %324 = vadd.xlane.f32.xlu0 %v321
    %v325 = vpop.xlane.xlu0 %324
    %v326 = vmul.f32 %v323, 0.007874016
    %v327 = vmul.f32 %v325, 0.007874016
    %v328 = vrsqrt.pop %v326
    %v329 = vmul.f32 %v326, %v328
    %vm330 = vcmp.eq.f32.partialorder %v326, inf
    %v331 = vsel %vm330, %v326, %v329
    %vm332 = vcmp.eq.f32.partialorder %v326, 0.0
    %v333 = vand.u32 %v326, 2147483648
    %v334 = vsel %vm332, %v333, %v331
    %v335 = vrsqrt.pop %v327
    %v336 = vmul.f32 %v327, %v335
    %vm337 = vcmp.eq.f32.partialorder %v327, inf
    %v338 = vsel %vm337, %v327, %v336
    %vm339 = vcmp.eq.f32.partialorder %v327, 0.0
    %v340 = vand.u32 %v327, 2147483648
    %v341 = vsel %vm339, %v340, %v338
    %v342 = vadd.f32 %v334, 0.001
    %v343 = vadd.f32 %v341, 0.001
    %v344 = vrcp.pop %v342
    %v345 = vmul.f32 1.0, %v344
    %v346 = vrcp.pop %v343
    %v347 = vmul.f32 1.0, %v346
    %v348 = vmul.f32 %v318, %v345
    %v349 = vmul.f32 %v319, %v347
    %v350 = vld [vmem:[%s5] sm:$0x1]
    %v352 = vlaneseq
    %v353 = vshrl.u32 %v352, 7
    %v354 = vsub.s32 0, %v353
    %v355 = vrot.slane %v350, %v354
    %v357 = vmul.f32 %v348, %v355
    %v358 = vmul.f32 %v349, %v355
    %v359 = vld [vmem:[%s6] sm:$0x1]
    %v361 = vlaneseq
    %v362 = vshrl.u32 %v361, 7
    %v363 = vsub.s32 0, %v362
    %v364 = vrot.slane %v359, %v363
    %v366 = vadd.f32 %v357, %v364
    %v367 = vadd.f32 %v358, %v364
    %368 = vst [vmem:[#allocation8] sm:$0xff] %v366
    %369 = vst [vmem:[#allocation8 + $0x8] sm:$0xff] %v367
    // Predicated region
    $region42: #{tpu_custom_call.1} parent=1 // pred_check
      _
    $region43: #{tpu_custom_call.1} parent=1 // pred_check_branch
      %371 = sbr.rel (0) target = $region45
    $region44: #{tpu_custom_call.1} parent=1 // pred_region
      %s373 = ssub.s32 256, 256
      %374 = vsyncadd [#allocation4], %s373
      %s375 = sshll.u32 [#allocation8], 4
      %s376 = int_to_ptr.vmem [resolvable:$true] %s375
      %381 = dma.vmem_to_hbm [thread:$0]  %s376, 256, %s7, [#allocation4], 128, 128, 8
    $region45: #{tpu_custom_call.1} parent=1 // pred_fallthru
      _
    // Predicated region
    $region46: #{tpu_custom_call.1} parent=1 // pred_check
      _
    $region47: #{tpu_custom_call.1} parent=1 // pred_check_branch
      %383 = sbr.rel (0) target = $region49
    $region48: #{tpu_custom_call.1} parent=1 // pred_region
      %384 = dma.done [#allocation4], 256
    $region49: #{tpu_custom_call.1} parent=1 // pred_fallthru
      _
    %385 = vsyncpa [#allocation3], 1
    %386 = vsyncpa [#allocation6], 1
    %387 = vsyncpa [#allocation4], 1

// kernel: tpu_custom_call.1
$region0: #{tpu_custom_call.1}
  #allocation0 [shape = 'u32[]', space=smem, size = 0x4, offset = 0x4, fixed_abs, tag = 'smem constant byte address 0x4 - core index']
  #allocation1 [shape = 'u32[144,128]{1,0:T(1,128)}', space=vmem, size = 0x12000, scoped, tag = 'internal scratch']
  %s0 = inlined_call_operand.hbm [shape: f32[16,128], index: 0, kind: input, shape index: {}]
  %s1 = inlined_call_operand.hbm [shape: f32[128,256], index: 1, kind: input, shape index: {}]
  %s2 = inlined_call_operand.vmem [shape: f32[1,256], index: 2, kind: input, shape index: {}]
  %s3 = inlined_call_operand.hbm [shape: f32[256,128], index: 3, kind: input, shape index: {}]
  %s4 = inlined_call_operand.vmem [shape: f32[1,128], index: 4, kind: input, shape index: {}]
  %s5 = inlined_call_operand.vmem [shape: f32[1,128], index: 5, kind: input, shape index: {}]
  %s6 = inlined_call_operand.vmem [shape: f32[1,128], index: 6, kind: input, shape index: {}]
  %s7 = inlined_call_operand.hbm [shape: f32[16,128], index: 7, kind: output, shape index: {}]
  %s8 = sld [smem:[#allocation0]]
  $region50: #{tpu_custom_call.1} parent=0
    _
  %s10 = ssub.s32 1, %s8
  %s11 = scalar_select 0, %s10, %s8
  $region1: #{tpu_custom_call.1} parent=0
    #allocation2 [shape = 'u8[8192]{0}', space=vmem, size = 0x2000, scoped, tag = 'input window, operand 0, single buffered']
    #allocation3 [shape = 's32[1]{0}', space=sflag, size = 0x4, scoped, tag = 'scoped memory for tpu_custom_call.1']
    #allocation4 [shape = 's32[1]{0}', space=sflag, size = 0x4, scoped, tag = 'scoped memory for tpu_custom_call.1']
    #allocation5 [shape = 'u8[131072]{0}', space=vmem, size = 0x20000, scoped, tag = 'input window, operand 1, single buffered']
    #allocation6 [shape = 's32[1]{0}', space=sflag, size = 0x4, scoped, tag = 'scoped memory for tpu_custom_call.1']
    #allocation7 [shape = 'u8[131072]{0}', space=vmem, size = 0x20000, scoped, tag = 'input window, operand 3, single buffered']
    #allocation8 [shape = 'u8[8192]{0}', space=vmem, size = 0x2000, scoped, tag = 'output window, operand 0, single buffered']
    %12 = vsyncpa [#allocation3], 0
    %13 = vsyncpa [#allocation6], 0
    %14 = vsyncpa [#allocation4], 0
    // Predicated region
    $region2: #{tpu_custom_call.1} parent=1 // pred_check
      _
    $region3: #{tpu_custom_call.1} parent=1 // pred_check_branch
      %16 = sbr.rel (0) target = $region5
    $region4: #{tpu_custom_call.1} parent=1 // pred_region
      %s18 = ssub.s32 256, 256
      %19 = vsyncadd [#allocation3], %s18
      %s20 = sshll.u32 [#allocation2], 4
      %s21 = int_to_ptr.vmem [resolvable:$true] %s20
      %26 = dma.hbm_to_vmem [thread:$0]  %s0, 256, %s21, [#allocation3], 128, 128, 8
    $region5: #{tpu_custom_call.1} parent=1 // pred_fallthru
      _
    // Predicated region
    $region6: #{tpu_custom_call.1} parent=1 // pred_check
      _
    $region7: #{tpu_custom_call.1} parent=1 // pred_check_branch
      %28 = sbr.rel (0) target = $region9
    $region8: #{tpu_custom_call.1} parent=1 // pred_region
      %s30 = ssub.s32 4096, 4096
      %31 = vsyncadd [#allocation6], %s30
      %s32 = sshll.u32 [#allocation5], 4
      %s33 = int_to_ptr.vmem [resolvable:$true] %s32
      %38 = dma.hbm_to_vmem [thread:$0]  %s1, 4096, %s33, [#allocation6], 256, 256, 16
    $region9: #{tpu_custom_call.1} parent=1 // pred_fallthru
      _
    // Predicated region
    $region10: #{tpu_custom_call.1} parent=1 // pred_check
      _
    $region11: #{tpu_custom_call.1} parent=1 // pred_check_branch
      %40 = sbr.rel (0) target = $region13
    $region12: #{tpu_custom_call.1} parent=1 // pred_region
      _
    $region13: #{tpu_custom_call.1} parent=1 // pred_fallthru
      _
    // Predicated region
    $region14: #{tpu_custom_call.1} parent=1 // pred_check
      _
    $region15: #{tpu_custom_call.1} parent=1 // pred_check_branch
      %42 = sbr.rel (0) target = $region17
    $region16: #{tpu_custom_call.1} parent=1 // pred_region
      %s44 = ssub.s32 4096, 4096
      %45 = vsyncadd [#allocation6], %s44
      %s46 = sshll.u32 [#allocation7], 4
      %s47 = int_to_ptr.vmem [resolvable:$true] %s46
      %52 = dma.hbm_to_vmem [thread:$0]  %s3, 4096, %s47, [#allocation6], 128, 128, 8
    $region17: #{tpu_custom_call.1} parent=1 // pred_fallthru
      _
    // Predicated region
    $region18: #{tpu_custom_call.1} parent=1 // pred_check
      _
    $region19: #{tpu_custom_call.1} parent=1 // pred_check_branch
      %54 = sbr.rel (0) target = $region21
    $region20: #{tpu_custom_call.1} parent=1 // pred_region
      _
    $region21: #{tpu_custom_call.1} parent=1 // pred_fallthru
      _
    // Predicated region
    $region22: #{tpu_custom_call.1} parent=1 // pred_check
      _
    $region23: #{tpu_custom_call.1} parent=1 // pred_check_branch
      %56 = sbr.rel (0) target = $region25
    $region24: #{tpu_custom_call.1} parent=1 // pred_region
      _
    $region25: #{tpu_custom_call.1} parent=1 // pred_fallthru
      _
    // Predicated region
    $region26: #{tpu_custom_call.1} parent=1 // pred_check
      _
    $region27: #{tpu_custom_call.1} parent=1 // pred_check_branch
      %58 = sbr.rel (0) target = $region29
    $region28: #{tpu_custom_call.1} parent=1 // pred_region
      _
    $region29: #{tpu_custom_call.1} parent=1 // pred_fallthru
      _
    // Predicated region
    $region30: #{tpu_custom_call.1} parent=1 // pred_check
      _
    $region31: #{tpu_custom_call.1} parent=1 // pred_check_branch
      %60 = sbr.rel (0) target = $region33
    $region32: #{tpu_custom_call.1} parent=1 // pred_region
      %61 = dma.done [#allocation3], 256
    $region33: #{tpu_custom_call.1} parent=1 // pred_fallthru
      _
    // Predicated region
    $region34: #{tpu_custom_call.1} parent=1 // pred_check
      _
    $region35: #{tpu_custom_call.1} parent=1 // pred_check_branch
      %63 = sbr.rel (0) target = $region37
    $region36: #{tpu_custom_call.1} parent=1 // pred_region
      %64 = dma.done [#allocation6], 4096
    $region37: #{tpu_custom_call.1} parent=1 // pred_fallthru
      _
    // Predicated region
    $region38: #{tpu_custom_call.1} parent=1 // pred_check
      _
    $region39: #{tpu_custom_call.1} parent=1 // pred_check_branch
      %66 = sbr.rel (0) target = $region41
    $region40: #{tpu_custom_call.1} parent=1 // pred_region
      %67 = dma.done [#allocation6], 4096
    $region41: #{tpu_custom_call.1} parent=1 // pred_fallthru
      _
    %v68 = vld [vmem:[#allocation2] sm:$0xff]
    %v69 = vld [vmem:[#allocation2 + $0x8] sm:$0xff]
    %v70 = vld [vmem:[#allocation5] sm:$0xff]
    %v71 = vld [vmem:[#allocation5 + $0x8] sm:$0xff]
    %v72 = vld [vmem:[#allocation5 + $0x10] sm:$0xff]
    %v73 = vld [vmem:[#allocation5 + $0x18] sm:$0xff]
    %v74 = vld [vmem:[#allocation5 + $0x20] sm:$0xff]
    %v75 = vld [vmem:[#allocation5 + $0x28] sm:$0xff]
    %v76 = vld [vmem:[#allocation5 + $0x30] sm:$0xff]
    %v77 = vld [vmem:[#allocation5 + $0x38] sm:$0xff]
    %v78 = vld [vmem:[#allocation5 + $0x40] sm:$0xff]
    %v79 = vld [vmem:[#allocation5 + $0x48] sm:$0xff]
    %v80 = vld [vmem:[#allocation5 + $0x50] sm:$0xff]
    %v81 = vld [vmem:[#allocation5 + $0x58] sm:$0xff]
    %v82 = vld [vmem:[#allocation5 + $0x60] sm:$0xff]
    %v83 = vld [vmem:[#allocation5 + $0x68] sm:$0xff]
    %v84 = vld [vmem:[#allocation5 + $0x70] sm:$0xff]
    %v85 = vld [vmem:[#allocation5 + $0x78] sm:$0xff]
    %v86 = vld [vmem:[#allocation5 + $0x80] sm:$0xff]
    %v87 = vld [vmem:[#allocation5 + $0x88] sm:$0xff]
    %v88 = vld [vmem:[#allocation5 + $0x90] sm:$0xff]
    %v89 = vld [vmem:[#allocation5 + $0x98] sm:$0xff]
    %v90 = vld [vmem:[#allocation5 + $0xa0] sm:$0xff]
    %v91 = vld [vmem:[#allocation5 + $0xa8] sm:$0xff]
    %v92 = vld [vmem:[#allocation5 + $0xb0] sm:$0xff]
    %v93 = vld [vmem:[#allocation5 + $0xb8] sm:$0xff]
    %v94 = vld [vmem:[#allocation5 + $0xc0] sm:$0xff]
    %v95 = vld [vmem:[#allocation5 + $0xc8] sm:$0xff]
    %v96 = vld [vmem:[#allocation5 + $0xd0] sm:$0xff]
    %v97 = vld [vmem:[#allocation5 + $0xd8] sm:$0xff]
    %v98 = vld [vmem:[#allocation5 + $0xe0] sm:$0xff]
    %v99 = vld [vmem:[#allocation5 + $0xe8] sm:$0xff]
    %v100 = vld [vmem:[#allocation5 + $0xf0] sm:$0xff]
    %v101 = vld [vmem:[#allocation5 + $0xf8] sm:$0xff]
    %v102 = vld [vmem:[#allocation7] sm:$0xff]
    %v103 = vld [vmem:[#allocation7 + $0x8] sm:$0xff]
    %v104 = vld [vmem:[#allocation7 + $0x10] sm:$0xff]
    %v105 = vld [vmem:[#allocation7 + $0x18] sm:$0xff]
    %v106 = vld [vmem:[#allocation7 + $0x20] sm:$0xff]
    %v107 = vld [vmem:[#allocation7 + $0x28] sm:$0xff]
    %v108 = vld [vmem:[#allocation7 + $0x30] sm:$0xff]
    %v109 = vld [vmem:[#allocation7 + $0x38] sm:$0xff]
    %v110 = vld [vmem:[#allocation7 + $0x40] sm:$0xff]
    %v111 = vld [vmem:[#allocation7 + $0x48] sm:$0xff]
    %v112 = vld [vmem:[#allocation7 + $0x50] sm:$0xff]
    %v113 = vld [vmem:[#allocation7 + $0x58] sm:$0xff]
    %v114 = vld [vmem:[#allocation7 + $0x60] sm:$0xff]
    %v115 = vld [vmem:[#allocation7 + $0x68] sm:$0xff]
    %v116 = vld [vmem:[#allocation7 + $0x70] sm:$0xff]
    %v117 = vld [vmem:[#allocation7 + $0x78] sm:$0xff]
    %v118 = vld [vmem:[#allocation7 + $0x80] sm:$0xff]
    %v119 = vld [vmem:[#allocation7 + $0x88] sm:$0xff]
    %v120 = vld [vmem:[#allocation7 + $0x90] sm:$0xff]
    %v121 = vld [vmem:[#allocation7 + $0x98] sm:$0xff]
    %v122 = vld [vmem:[#allocation7 + $0xa0] sm:$0xff]
    %v123 = vld [vmem:[#allocation7 + $0xa8] sm:$0xff]
    %v124 = vld [vmem:[#allocation7 + $0xb0] sm:$0xff]
    %v125 = vld [vmem:[#allocation7 + $0xb8] sm:$0xff]
    %v126 = vld [vmem:[#allocation7 + $0xc0] sm:$0xff]
    %v127 = vld [vmem:[#allocation7 + $0xc8] sm:$0xff]
    %v128 = vld [vmem:[#allocation7 + $0xd0] sm:$0xff]
    %v129 = vld [vmem:[#allocation7 + $0xd8] sm:$0xff]
    %v130 = vld [vmem:[#allocation7 + $0xe0] sm:$0xff]
    %v131 = vld [vmem:[#allocation7 + $0xe8] sm:$0xff]
    %v132 = vld [vmem:[#allocation7 + $0xf0] sm:$0xff]
    %v133 = vld [vmem:[#allocation7 + $0xf8] sm:$0xff]
    %v134 = vld [vmem:[%s2] sm:$0x3]
    %v136 = vlaneseq
    %v137 = vshrl.u32 %v136, 7
    %v138 = vsub.s32 0, %v137
    %v139 = vrot.slane %v134, %v138
    %v140 = vlaneseq
    %v141 = vshrl.u32 %v140, 7
    %v142 = vsub.s32 1, %v141
    %v143 = vrot.slane %v134, %v142
    %146 = vmatprep.subr.mxu0 %v71
    %147 = vmatpush1.msra.mxu0 %v70
    %148 = vmatprep.subr.mxu0 %v73
    %149 = vmatpush1.msra.mxu0 %v72
    %150 = vmatprep.subr.mxu0 %v75
    %151 = vmatpush1.msra.mxu0 %v74
    %152 = vmatprep.subr.mxu0 %v77
    %153 = vmatpush1.msra.mxu0 %v76
    %154 = vmatprep.subr.mxu0 %v79
    %155 = vmatpush1.msra.mxu0 %v78
    %156 = vmatprep.subr.mxu0 %v81
    %157 = vmatpush1.msra.mxu0 %v80
    %158 = vmatprep.subr.mxu0 %v83
    %159 = vmatpush1.msra.mxu0 %v82
    %160 = vmatprep.subr.mxu0 %v85
    %161 = vmatpush1.msra.mxu0 %v84
    %162 = vmatprep.subr.mxu0 %v87
    %163 = vmatpush1.msra.mxu0 %v86
    %164 = vmatprep.subr.mxu0 %v89
    %165 = vmatpush1.msra.mxu0 %v88
    %166 = vmatprep.subr.mxu0 %v91
    %167 = vmatpush1.msra.mxu0 %v90
    %168 = vmatprep.subr.mxu0 %v93
    %169 = vmatpush1.msra.mxu0 %v92
    %170 = vmatprep.subr.mxu0 %v95
    %171 = vmatpush1.msra.mxu0 %v94
    %172 = vmatprep.subr.mxu0 %v97
    %173 = vmatpush1.msra.mxu0 %v96
    %174 = vmatprep.subr.mxu0 %v99
    %175 = vmatpush1.msra.mxu0 %v98
    %176 = vmatprep.subr.mxu0 %v101
    %177 = vmatpush1.msra.mxu0 %v100
    %178 = vmatprep.subr.mxu0 0.0
    %179 = vmatpush1.msra.mxu0 0.0
    %180 = vmatprep.subr.mxu0 0.0
    %181 = vmatpush1.msra.mxu0 0.0
    %182 = vmatprep.subr.mxu0 0.0
    %183 = vmatpush1.msra.mxu0 0.0
    %184 = vmatprep.subr.mxu0 0.0
    %185 = vmatpush1.msra.mxu0 0.0
    %186 = vmatprep.subr.mxu0 0.0
    %187 = vmatpush1.msra.mxu0 0.0
    %188 = vmatprep.subr.mxu0 0.0
    %189 = vmatpush1.msra.mxu0 0.0
    %190 = vmatprep.subr.mxu0 0.0
    %191 = vmatpush1.msra.mxu0 0.0
    %192 = vmatprep.subr.mxu0 0.0
    %193 = vmatpush1.msra.mxu0 0.0
    %194 = vmatprep.subr.mxu0 0.0
    %195 = vmatpush1.msra.mxu0 0.0
    %196 = vmatprep.subr.mxu0 0.0
    %197 = vmatpush1.msra.mxu0 0.0
    %198 = vmatprep.subr.mxu0 0.0
    %199 = vmatpush1.msra.mxu0 0.0
    %200 = vmatprep.subr.mxu0 0.0
    %201 = vmatpush1.msra.mxu0 0.0
    %202 = vmatprep.subr.mxu0 0.0
    %203 = vmatpush1.msra.mxu0 0.0
    %204 = vmatprep.subr.mxu0 0.0
    %205 = vmatpush1.msra.mxu0 0.0
    %206 = vmatprep.subr.mxu0 0.0
    %207 = vmatpush1.msra.mxu0 0.0
    %208 = vmatprep.subr.mxu0 0.0
    %209 = vmatpush1.msra.mxu0 0.0
    %210 = vmatprep.mubr.f32.mxu0 0.0
    %211 = vmatmul.mubr.f32.gmra.mrb[0].mxu0 %v68
    %v212 = vpop.f32.mrb[0].mxu0
    %v213 = vadd.f32 %v139, %v212
    %v214 = vpop.f32.mrb[0].mxu0
    %v215 = vadd.f32 %v143, %v214
    %216 = vmatprep.mubr.f32.mxu0 0.0
    %217 = vmatmul.mubr.f32.gmra.mrb[0].mxu0 %v69
    %v218 = vpop.f32.mrb[0].mxu0
    %v219 = vadd.f32 %v139, %v218
    %v220 = vpop.f32.mrb[0].mxu0
    %v221 = vadd.f32 %v143, %v220
    %222 = vdwg.mxu0
    %v223 = vmax.f32 %v213, 0.0
    %v224 = vmax.f32 %v215, 0.0
    %v225 = vmax.f32 %v219, 0.0
    %v226 = vmax.f32 %v221, 0.0
    %v227 = vld [vmem:[%s4] sm:$0x1]
    %v229 = vlaneseq
    %v230 = vshrl.u32 %v229, 7
    %v231 = vsub.s32 0, %v230
    %v232 = vrot.slane %v227, %v231
    %234 = vmatprep.subr.mxu0 0.0
    %235 = vmatpush1.msra.mxu0 %v102
    %236 = vmatprep.subr.mxu0 0.0
    %237 = vmatpush1.msra.mxu0 %v103
    %238 = vmatprep.subr.mxu0 0.0
    %239 = vmatpush1.msra.mxu0 %v104
    %240 = vmatprep.subr.mxu0 0.0
    %241 = vmatpush1.msra.mxu0 %v105
    %242 = vmatprep.subr.mxu0 0.0
    %243 = vmatpush1.msra.mxu0 %v106
    %244 = vmatprep.subr.mxu0 0.0
    %245 = vmatpush1.msra.mxu0 %v107
    %246 = vmatprep.subr.mxu0 0.0
    %247 = vmatpush1.msra.mxu0 %v108
    %248 = vmatprep.subr.mxu0 0.0
    %249 = vmatpush1.msra.mxu0 %v109
    %250 = vmatprep.subr.mxu0 0.0
    %251 = vmatpush1.msra.mxu0 %v110
    %252 = vmatprep.subr.mxu0 0.0
    %253 = vmatpush1.msra.mxu0 %v111
    %254 = vmatprep.subr.mxu0 0.0
    %255 = vmatpush1.msra.mxu0 %v112
    %256 = vmatprep.subr.mxu0 0.0
    %257 = vmatpush1.msra.mxu0 %v113
    %258 = vmatprep.subr.mxu0 0.0
    %259 = vmatpush1.msra.mxu0 %v114
    %260 = vmatprep.subr.mxu0 0.0
    %261 = vmatpush1.msra.mxu0 %v115
    %262 = vmatprep.subr.mxu0 0.0
    %263 = vmatpush1.msra.mxu0 %v116
    %264 = vmatprep.subr.mxu0 0.0
    %265 = vmatpush1.msra.mxu0 %v117
    %266 = vmatprep.subr.mxu0 0.0
    %267 = vmatpush1.msra.mxu0 %v118
    %268 = vmatprep.subr.mxu0 0.0
    %269 = vmatpush1.msra.mxu0 %v119
    %270 = vmatprep.subr.mxu0 0.0
    %271 = vmatpush1.msra.mxu0 %v120
    %272 = vmatprep.subr.mxu0 0.0
    %273 = vmatpush1.msra.mxu0 %v121
    %274 = vmatprep.subr.mxu0 0.0
    %275 = vmatpush1.msra.mxu0 %v122
    %276 = vmatprep.subr.mxu0 0.0
    %277 = vmatpush1.msra.mxu0 %v123
    %278 = vmatprep.subr.mxu0 0.0
    %279 = vmatpush1.msra.mxu0 %v124
    %280 = vmatprep.subr.mxu0 0.0
    %281 = vmatpush1.msra.mxu0 %v125
    %282 = vmatprep.subr.mxu0 0.0
    %283 = vmatpush1.msra.mxu0 %v126
    %284 = vmatprep.subr.mxu0 0.0
    %285 = vmatpush1.msra.mxu0 %v127
    %286 = vmatprep.subr.mxu0 0.0
    %287 = vmatpush1.msra.mxu0 %v128
    %288 = vmatprep.subr.mxu0 0.0
    %289 = vmatpush1.msra.mxu0 %v129
    %290 = vmatprep.subr.mxu0 0.0
    %291 = vmatpush1.msra.mxu0 %v130
    %292 = vmatprep.subr.mxu0 0.0
    %293 = vmatpush1.msra.mxu0 %v131
    %294 = vmatprep.subr.mxu0 0.0
    %295 = vmatpush1.msra.mxu0 %v132
    %296 = vmatprep.subr.mxu0 0.0
    %297 = vmatpush1.msra.mxu0 %v133
    %298 = vmatprep.mubr.f32.mxu0 %v224
    %299 = vmatmul.mubr.f32.gmra.mrb[0].mxu0 %v223
    %v300 = vpop.f32.mrb[0].mxu0
    %v301 = vadd.f32 %v232, %v300
    %v302 = vpop.f32.mrb[0].mxu0
    %303 = vmatprep.mubr.f32.mxu0 %v226
    %304 = vmatmul.mubr.f32.gmra.mrb[0].mxu0 %v225
    %v305 = vpop.f32.mrb[0].mxu0
    %v306 = vadd.f32 %v232, %v305
    %v307 = vpop.f32.mrb[0].mxu0
    %308 = vdwg.mxu0
    %v309 = vadd.f32 %v301, %v68
    %v310 = vadd.f32 %v306, %v69
    %311 = vadd.xlane.f32.xlu0 %v309
    %v312 = vpop.xlane.xlu0 %311
    %313 = vadd.xlane.f32.xlu0 %v310
    %v314 = vpop.xlane.xlu0 %313
    %v315 = vrcp.pop 128.0
    %v316 = vmul.f32 %v312, %v315
    %v317 = vmul.f32 %v314, %v315
    %v318 = vsub.f32 %v309, %v316
    %v319 = vsub.f32 %v310, %v317
    %v320 = vmul.f32 %v318, %v318
    %v321 = vmul.f32 %v319, %v319
    %322 = vadd.xlane.f32.xlu0 %v320
    %v323 = vpop.xlane.xlu0 %322
    %324 = vadd.xlane.f32.xlu0 %v321
    %v325 = vpop.xlane.xlu0 %324
    %v326 = vmul.f32 %v323, 0.007874016
    %v327 = vmul.f32 %v325, 0.007874016
    %v328 = vrsqrt.pop %v326
    %v329 = vmul.f32 %v326, %v328
    %vm330 = vcmp.eq.f32.partialorder %v326, inf
    %v331 = vsel %vm330, %v326, %v329
    %vm332 = vcmp.eq.f32.partialorder %v326, 0.0
    %v333 = vand.u32 %v326, 2147483648
    %v334 = vsel %vm332, %v333, %v331
    %v335 = vrsqrt.pop %v327
    %v336 = vmul.f32 %v327, %v335
    %vm337 = vcmp.eq.f32.partialorder %v327, inf
    %v338 = vsel %vm337, %v327, %v336
    %vm339 = vcmp.eq.f32.partialorder %v327, 0.0
    %v340 = vand.u32 %v327, 2147483648
    %v341 = vsel %vm339, %v340, %v338
    %v342 = vadd.f32 %v334, 0.001
    %v343 = vadd.f32 %v341, 0.001
    %v344 = vrcp.pop %v342
    %v345 = vmul.f32 1.0, %v344
    %v346 = vrcp.pop %v343
    %v347 = vmul.f32 1.0, %v346
    %v348 = vmul.f32 %v318, %v345
    %v349 = vmul.f32 %v319, %v347
    %v350 = vld [vmem:[%s5] sm:$0x1]
    %v352 = vlaneseq
    %v353 = vshrl.u32 %v352, 7
    %v354 = vsub.s32 0, %v353
    %v355 = vrot.slane %v350, %v354
    %v357 = vmul.f32 %v348, %v355
    %v358 = vmul.f32 %v349, %v355
    %v359 = vld [vmem:[%s6] sm:$0x1]
    %v361 = vlaneseq
    %v362 = vshrl.u32 %v361, 7
    %v363 = vsub.s32 0, %v362
    %v364 = vrot.slane %v359, %v363
    %v366 = vadd.f32 %v357, %v364
    %v367 = vadd.f32 %v358, %v364
    %368 = vst [vmem:[#allocation8] sm:$0xff] %v366
    %369 = vst [vmem:[#allocation8 + $0x8] sm:$0xff] %v367
    // Predicated region
    $region42: #{tpu_custom_call.1} parent=1 // pred_check
      _
    $region43: #{tpu_custom_call.1} parent=1 // pred_check_branch
      %371 = sbr.rel (0) target = $region45
    $region44: #{tpu_custom_call.1} parent=1 // pred_region
      %s373 = ssub.s32 256, 256
      %374 = vsyncadd [#allocation4], %s373
      %s375 = sshll.u32 [#allocation8], 4
      %s376 = int_to_ptr.vmem [resolvable:$true] %s375
      %381 = dma.vmem_to_hbm [thread:$0]  %s376, 256, %s7, [#allocation4], 128, 128, 8
    $region45: #{tpu_custom_call.1} parent=1 // pred_fallthru
      _
    // Predicated region
    $region46: #{tpu_custom_call.1} parent=1 // pred_check
      _
    $region47: #{tpu_custom_call.1} parent=1 // pred_check_branch
      %383 = sbr.rel (0) target = $region49
    $region48: #{tpu_custom_call.1} parent=1 // pred_region
      %384 = dma.done [#allocation4], 256
    $region49: #{tpu_custom_call.1} parent=1 // pred_fallthru
      _
    %385 = vsyncpa [#allocation3], 1
    %386 = vsyncpa [#allocation6], 1
    %387 = vsyncpa [#allocation4], 1

</llo_original>
